<compile_context>
chip_gen: v7x
topology: tpu7x:2x2x1
jax: 0.10.0
libtpu: 0.0.40
codegen_flags: <defaults>
</compile_context>

<pallas_src>
import functools
import math

import jax
import jax.numpy as jnp
from jax.experimental import pallas as pl
from jax.experimental.pallas import tpu as pltpu

_LANE = 128


@functools.lru_cache(maxsize=1)
def _block_budget_bytes():
    """Per-buffer block-size target tuned per TPU generation."""
    try:
        kind = jax.devices()[0].device_kind.lower()
    except Exception:
        return 4 << 20
    if "v5 lite" in kind or "v5e" in kind or "v5lite" in kind:
        return 2 << 20          # 8 MiB in flight: fits v5e scoped-VMEM default
    if "7" in kind:
        return 8 << 20          # v7x: 3.2 TB/s HBM -> amortize per-step overhead
    if "v6" in kind:
        return 4 << 20
    return 4 << 20


def _normalize_kernel(x_ref, mean_ref, inv_ref, o_ref):
    # Pure HBM-streaming op: (x - mean) * inv_std in f32, cast on store.
    x = x_ref[...].astype(jnp.float32)
    o_ref[...] = ((x - mean_ref[...]) * inv_ref[...]).astype(o_ref.dtype)


def _round_down(a, m):
    return (a // m) * m


def _round_up(a, m):
    return ((a + m - 1) // m) * m


def _normalize_2d(x2, mean_f32, inv_std_f32):
    rows, feat = x2.shape
    out_dtype = x2.dtype
    itemsize = jnp.dtype(out_dtype).itemsize
    sub = max(8, 32 // itemsize)          # sublane multiple: 8 f32, 16 bf16, 32 i8
    budget = _block_budget_bytes()

    # --- lane-dense folding (bounded, pad-free) ------------------------------
    k = 1
    if feat % _LANE != 0:
        kc = _LANE // math.gcd(feat, _LANE)
        if rows % kc == 0 and sub * kc * feat * itemsize <= budget:
            k = kc
    W = k * feat
    R = rows // k
    xw = x2.reshape(R, W)                 # contiguous reshape: no copy
    mean_row = jnp.tile(mean_f32, k).reshape(1, W)
    inv_row = jnp.tile(inv_std_f32, k).reshape(1, W)

    # --- column tile: full width unless even a sub-row stripe is over budget --
    if W <= _LANE or W * sub * itemsize <= budget:
        tc = W                             # equals full dim -> legal even if %128 != 0
    else:
        tc = max(_LANE, _round_down(budget // (sub * itemsize), _LANE))
        tc = min(tc, _round_down(W, _LANE))
    nc = int(pl.cdiv(W, tc))

    # --- row tile: fill the budget, but keep >= ~8 grid steps when possible ---
    if R <= sub:
        tb = R                             # equals full dim -> legal
    else:
        tb = min(max(sub, _round_down(budget // (tc * itemsize), sub)),
                 _round_down(R, sub))
        min_iters = 8
        need_nr = int(pl.cdiv(min_iters, nc))
        if need_nr > 1:
            cap = max(sub, _round_up(int(pl.cdiv(R, need_nr)), sub))
            tb = max(sub, min(tb, cap))
    nr = int(pl.cdiv(R, tb))               # partial edge blocks are masked by Pallas

    out = pl.pallas_call(
        _normalize_kernel,
        out_shape=jax.ShapeDtypeStruct((R, W), out_dtype),
        grid=(nr, nc),
        in_specs=[
            pl.BlockSpec((tb, tc), lambda i, j: (i, j)),
            pl.BlockSpec((1, tc), lambda i, j: (0, j)),
            pl.BlockSpec((1, tc), lambda i, j: (0, j)),
        ],
        out_specs=pl.BlockSpec((tb, tc), lambda i, j: (i, j)),
        compiler_params=pltpu.CompilerParams(
            dimension_semantics=("parallel", "parallel"),
            vmem_limit_bytes=48 << 20,
        ),
    )(xw, mean_row, inv_row)
    return out.reshape(rows, feat)


def normalize(x, mean, std):
    """(x - mean) / (std + 1e-7), per-feature mean/std broadcast over rows.

    Accepts the module's "(..., features, 1)" layout as well as "(..., features)".
    """
    orig_shape = x.shape
    mean_f = jnp.ravel(mean).astype(jnp.float32)
    std_f = jnp.ravel(std).astype(jnp.float32)
    feat = int(mean_f.shape[0])

    x_work = x
    if (len(orig_shape) >= 2 and orig_shape[-1] == 1 and feat > 1
            and orig_shape[-2] == feat):
        x_work = x.reshape(orig_shape[:-1])        # squeeze trailing singleton

    f_dim = x_work.shape[-1]
    if feat == 1:                                  # scalar mean/std
        mean_f = jnp.broadcast_to(mean_f, (f_dim,))
        std_f = jnp.broadcast_to(std_f, (f_dim,))
        feat = f_dim
    assert feat == f_dim, "mean/std size must match the feature dimension"

    inv_std = 1.0 / (std_f + jnp.float32(1e-07))   # eps folded in once, in f32

    out = _normalize_2d(x_work.reshape(-1, feat), mean_f, inv_std)
    return out.reshape(orig_shape)


if __name__ == "__main__":
    key = jax.random.PRNGKey(0)
    kx, km, ks, kx2, kx3 = jax.random.split(key, 5)

    # --- 3-D module layout: (batch, length, features, 1), mean/std (features,1)
    batch, length, feat = 2, 8, 32
    x = jax.random.normal(kx, (batch, length, feat, 1), dtype=jnp.float32)
    mean = jax.random.normal(km, (feat, 1), dtype=jnp.float32)
    std = jax.random.uniform(ks, (feat, 1), dtype=jnp.float32,
                             minval=0.5, maxval=1.5)
    out = jax.block_until_ready(normalize(x, mean, std))
    ref = (x - mean) / (std + 1e-07)
    assert out.shape == x.shape
    assert jnp.allclose(out, ref, atol=1e-5, rtol=1e-5)

    # --- 2-D module layout: (batch, features, 1) ------------------------------
    x2d = jax.random.normal(kx2, (4, feat, 1), dtype=jnp.float32)
    out2d = jax.block_until_ready(normalize(x2d, mean, std))
    ref2d = (x2d - mean) / (std + 1e-07)
    assert out2d.shape == x2d.shape
    assert jnp.allclose(out2d, ref2d, atol=1e-5, rtol=1e-5)

    # --- ragged rows + feat not a multiple of 128 (masked-edge fallback path) --
    xr = jax.random.normal(kx3, (3, 5, 48), dtype=jnp.float32)
    mr = jax.random.normal(km, (48,), dtype=jnp.float32)
    sr = jax.random.uniform(ks, (48,), dtype=jnp.float32, minval=0.5, maxval=1.5)
    outr = jax.block_until_ready(normalize(xr, mr, sr))
    refr = (xr - mr) / (sr + 1e-07)
    assert outr.shape == xr.shape
    assert jnp.allclose(outr, refr, atol=1e-5, rtol=1e-5)

    # --- rows divisible by k (lane-dense fold path) ----------------------------
    xf = jax.random.normal(kx2, (2, 8, 48), dtype=jnp.float32)
    outf = jax.block_until_ready(normalize(xf, mr, sr))
    reff = (xf - mr) / (sr + 1e-07)
    assert jnp.allclose(outf, reff, atol=1e-5, rtol=1e-5)

    # --- bf16 input: eps handled in f32, output cast back to bf16 --------------
    xb = x.astype(jnp.bfloat16)
    outb = jax.block_until_ready(normalize(xb, mean, std))
    refb = ((xb.astype(jnp.float32) - mean) / (std + 1e-07)).astype(jnp.bfloat16)
    assert outb.dtype == jnp.bfloat16
    assert jnp.allclose(outb.astype(jnp.float32), refb.astype(jnp.float32),
                        atol=2e-2, rtol=2e-2)

    print("KERNEL_OK")
</pallas_src>

<mosaic_0001>
module attributes {stable_mosaic.version = 11 : i64} {
  func.func @_normalize_kernel(%arg0: i32, %arg1: i32, %arg2: memref<4x128xf32, #tpu.memory_space<vmem>>, %arg3: memref<1x128xf32, #tpu.memory_space<vmem>>, %arg4: memref<1x128xf32, #tpu.memory_space<vmem>>, %arg5: memref<4x128xf32, #tpu.memory_space<vmem>>) attributes {dimension_semantics = [#tpu.dimension_semantics<parallel>, #tpu.dimension_semantics<parallel>], iteration_bounds = array<i64: 1, 1>, scalar_prefetch = 0 : i64, scratch_operands = 0 : i64, tpu.core_type = #tpu.core_type<tc>, window_params = [{transform_indices = @transform_0, window_bounds = array<i64: 4, 128>}, {transform_indices = @transform_1, window_bounds = array<i64: 1, 128>}, {transform_indices = @transform_2, window_bounds = array<i64: 1, 128>}, {transform_indices = @transform_3, window_bounds = array<i64: 4, 128>}]} {
    %c0 = arith.constant 0 : index
    %c0_0 = arith.constant 0 : index
    %0 = vector.load %arg2[%c0, %c0_0] : memref<4x128xf32, #tpu.memory_space<vmem>>, vector<4x128xf32>
    %c0_1 = arith.constant 0 : index
    %c0_2 = arith.constant 0 : index
    %1 = vector.load %arg3[%c0_1, %c0_2] : memref<1x128xf32, #tpu.memory_space<vmem>>, vector<1x128xf32>
    %2 = vector.broadcast %1 : vector<1x128xf32> to vector<4x128xf32>
    %3 = arith.subf %0, %2 : vector<4x128xf32>
    %c0_3 = arith.constant 0 : index
    %c0_4 = arith.constant 0 : index
    %4 = vector.load %arg4[%c0_3, %c0_4] : memref<1x128xf32, #tpu.memory_space<vmem>>, vector<1x128xf32>
    %5 = vector.broadcast %4 : vector<1x128xf32> to vector<4x128xf32>
    %6 = arith.mulf %3, %5 : vector<4x128xf32>
    %c0_5 = arith.constant 0 : index
    %c0_6 = arith.constant 0 : index
    %7 = vector.load %arg5[%c0_5, %c0_6] : memref<4x128xf32, #tpu.memory_space<vmem>>, vector<4x128xf32>
    tpu.vector_store %arg5[%c0_5, %c0_6], %6 {strides = array<i32>} : memref<4x128xf32, #tpu.memory_space<vmem>>, vector<4x128xf32>,
    return
  }
  func.func @transform_0(%arg0: i32, %arg1: i32) -> (i32, i32) {
    %c0_i32 = arith.constant 0 : i32
    return %arg0, %arg1 : i32, i32
  }
  func.func @transform_1(%arg0: i32, %arg1: i32) -> (i32, i32) {
    %c0_i32 = arith.constant 0 : i32
    %c0_i32_0 = arith.constant 0 : i32
    return %c0_i32, %arg1 : i32, i32
  }
  func.func @transform_2(%arg0: i32, %arg1: i32) -> (i32, i32) {
    %c0_i32 = arith.constant 0 : i32
    %c0_i32_0 = arith.constant 0 : i32
    return %c0_i32, %arg1 : i32, i32
  }
  func.func @transform_3(%arg0: i32, %arg1: i32) -> (i32, i32) {
    %c0_i32 = arith.constant 0 : i32
    return %arg0, %arg1 : i32, i32
  }
}

</mosaic_0001>

<llo_original>
// kernel: tpu_custom_call.1
$region0: #{tpu_custom_call.1}
  #allocation0 [shape = 'u32[]', space=smem, size = 0x4, offset = 0x4, fixed_abs, tag = 'smem constant byte address 0x4 - core index']
  #allocation1 [shape = 'u32[144,128]{1,0:T(1,128)}', space=vmem, size = 0x12000, scoped, tag = 'internal scratch']
  %s0 = inlined_call_operand.hbm [shape: f32[4,128], index: 0, kind: input, shape index: {}]
  %s1 = inlined_call_operand.vmem [shape: f32[1,128], index: 1, kind: input, shape index: {}]
  %s2 = inlined_call_operand.vmem [shape: f32[1,128], index: 2, kind: input, shape index: {}]
  %s3 = inlined_call_operand.hbm [shape: f32[4,128], index: 3, kind: output, shape index: {}]
  %s4 = sld [smem:[#allocation0]]
  $region26: #{tpu_custom_call.1} parent=0
    _
  %s6 = ssub.s32 1, %s4
  %s7 = scalar_select 0, %s6, %s4
  $region1: #{tpu_custom_call.1} parent=0
    #allocation2 [shape = 'u8[2048]{0}', space=vmem, size = 0x800, scoped, tag = 'input window, operand 0, single buffered']
    #allocation3 [shape = 's32[1]{0}', space=sflag, size = 0x4, scoped, tag = 'scoped memory for tpu_custom_call.1']
    #allocation4 [shape = 's32[1]{0}', space=sflag, size = 0x4, scoped, tag = 'scoped memory for tpu_custom_call.1']
    #allocation5 [shape = 'u8[2048]{0}', space=vmem, size = 0x800, scoped, tag = 'output window, operand 0, single buffered']
    %8 = vsyncpa [#allocation3], 0
    %9 = vsyncpa [#allocation4], 0
    // Predicated region
    $region2: #{tpu_custom_call.1} parent=1 // pred_check
      _
    $region3: #{tpu_custom_call.1} parent=1 // pred_check_branch
      %11 = sbr.rel (0) target = $region5
    $region4: #{tpu_custom_call.1} parent=1 // pred_region
      %s13 = ssub.s32 64, 64
      %14 = vsyncadd [#allocation3], %s13
      %s16 = sshll.u32 [#allocation2], 4
      %s17 = int_to_ptr.vmem [resolvable:$true] %s16
      %19 = dma.hbm_to_vmem [thread:$0]  %s0, 64, %s17, [#allocation3]
    $region5: #{tpu_custom_call.1} parent=1 // pred_fallthru
      _
    // Predicated region
    $region6: #{tpu_custom_call.1} parent=1 // pred_check
      _
    $region7: #{tpu_custom_call.1} parent=1 // pred_check_branch
      %21 = sbr.rel (0) target = $region9
    $region8: #{tpu_custom_call.1} parent=1 // pred_region
      _
    $region9: #{tpu_custom_call.1} parent=1 // pred_fallthru
      _
    // Predicated region
    $region10: #{tpu_custom_call.1} parent=1 // pred_check
      _
    $region11: #{tpu_custom_call.1} parent=1 // pred_check_branch
      %23 = sbr.rel (0) target = $region13
    $region12: #{tpu_custom_call.1} parent=1 // pred_region
      _
    $region13: #{tpu_custom_call.1} parent=1 // pred_fallthru
      _
    // Predicated region
    $region14: #{tpu_custom_call.1} parent=1 // pred_check
      _
    $region15: #{tpu_custom_call.1} parent=1 // pred_check_branch
      %25 = sbr.rel (0) target = $region17
    $region16: #{tpu_custom_call.1} parent=1 // pred_region
      %26 = dma.done [#allocation3], 64
    $region17: #{tpu_custom_call.1} parent=1 // pred_fallthru
      _
    %v27 = vld [vmem:[#allocation2] sm:$0xf]
    %v28 = vld [vmem:[%s1] sm:$0x1]
    %v30 = vlaneseq
    %v31 = vshrl.u32 %v30, 7
    %v32 = vsub.s32 0, %v31
    %v33 = vrot.slane %v28, %v32
    %v35 = vsub.f32 %v27, %v33
    %v36 = vld [vmem:[%s2] sm:$0x1]
    %v38 = vlaneseq
    %v39 = vshrl.u32 %v38, 7
    %v40 = vsub.s32 0, %v39
    %v41 = vrot.slane %v36, %v40
    %v43 = vmul.f32 %v35, %v41
    %44 = vst [vmem:[#allocation5] sm:$0xf] %v43
    // Predicated region
    $region18: #{tpu_custom_call.1} parent=1 // pred_check
      _
    $region19: #{tpu_custom_call.1} parent=1 // pred_check_branch
      %46 = sbr.rel (0) target = $region21
    $region20: #{tpu_custom_call.1} parent=1 // pred_region
      %s48 = ssub.s32 64, 64
      %49 = vsyncadd [#allocation4], %s48
      %s51 = sshll.u32 [#allocation5], 4
      %s52 = int_to_ptr.vmem [resolvable:$true] %s51
      %54 = dma.vmem_to_hbm [thread:$0]  %s52, 64, %s3, [#allocation4]
    $region21: #{tpu_custom_call.1} parent=1 // pred_fallthru
      _
    // Predicated region
    $region22: #{tpu_custom_call.1} parent=1 // pred_check
      _
    $region23: #{tpu_custom_call.1} parent=1 // pred_check_branch
      %56 = sbr.rel (0) target = $region25
    $region24: #{tpu_custom_call.1} parent=1 // pred_region
      %57 = dma.done [#allocation4], 64
    $region25: #{tpu_custom_call.1} parent=1 // pred_fallthru
      _
    %58 = vsyncpa [#allocation3], 1
    %59 = vsyncpa [#allocation4], 1

</llo_original>
